<compile_context>
chip_gen: v5e
topology: v5e:2x2
jax: 0.10.0
libtpu: 0.0.40
codegen_flags: <defaults>
</compile_context>

<pallas_src>
import functools

import jax
import jax.numpy as jnp
from jax.experimental import pallas as pl
from jax.experimental.pallas import tpu as pltpu


_LANE = 128          # lane-dense output padding
_DEF_TILE_M = 512    # token-tile rows (clamped to M for small inputs)
_VMEM_LIMIT = 32 * 1024 * 1024   # explicit scoped-VMEM budget (safe on v5e/v6e/v7x)


def _round_up(x, m):
    return ((x + m - 1) // m) * m


def _pad2(a, rows, cols):
    r, c = a.shape
    if r == rows and c == cols:
        return a
    return jnp.pad(a, ((0, rows - r), (0, cols - c)))


# ----------------------------------------------------------------------------
# Pallas kernels
# ----------------------------------------------------------------------------
def _mm_bias_kernel(x_ref, w_ref, b_ref, o_ref):
    # (TM, K) bf16 @ (K, Np) bf16 + (1, Np) f32 -> (TM, Np) f32 on the MXU.
    o_ref[...] = (
        jnp.dot(x_ref[...], w_ref[...], preferred_element_type=jnp.float32)
        + b_ref[...]
    )


def _decoder_kernel(fa_ref, add_ref, w_ref, b_ref, o_ref):
    # Fused attribute decoder: modulate the fattr tile in VMEM with the
    # per-spatial (id_proj + det_proj) term, then emit latent and rgb together
    # through one concatenated (and VAE-folded) output weight.
    mod = fa_ref[0].astype(jnp.float32) + add_ref[...]          # (TH, base) f32
    o_ref[0] = (
        jnp.dot(mod.astype(jnp.bfloat16), w_ref[...],
                preferred_element_type=jnp.float32)
        + b_ref[...]
    )


def _idext_kernel(x_ref, wdet_ref, bdet_ref, wid_ref, bid_ref,
                  det_ref, gid_ref, sum_ref, *, inv_m):
    # Fused ID extractor: the RGB tokens are read from HBM once; each tile
    # produces its detailed-ID rows and contributes to the pooled sum used for
    # the global-ID head (finalized on the last grid step).
    i = pl.program_id(0)

    @pl.when(i == 0)
    def _init():
        sum_ref[...] = jnp.zeros_like(sum_ref)

    det_ref[...] = (
        jnp.dot(x_ref[...], wdet_ref[...], preferred_element_type=jnp.float32)
        + bdet_ref[...]
    )
    sum_ref[...] += jnp.sum(x_ref[...].astype(jnp.float32), axis=0, keepdims=True)

    @pl.when(i == pl.num_programs(0) - 1)
    def _finalize():
        pooled = (sum_ref[...] * inv_m).astype(jnp.bfloat16)
        gid_ref[...] = (
            jnp.dot(pooled, wid_ref[...], preferred_element_type=jnp.float32)
            + bid_ref[...]
        )


def _pooled_linear_kernel(x_ref, w_ref, b_ref, o_ref, sum_ref, *, inv_m):
    # Tiled global-average-pool + linear (reduction over the token axis).
    i = pl.program_id(0)

    @pl.when(i == 0)
    def _init():
        sum_ref[...] = jnp.zeros_like(sum_ref)

    sum_ref[...] += jnp.sum(x_ref[...].astype(jnp.float32), axis=0, keepdims=True)

    @pl.when(i == pl.num_programs(0) - 1)
    def _finalize():
        pooled = (sum_ref[...] * inv_m).astype(jnp.bfloat16)
        o_ref[...] = (
            jnp.dot(pooled, w_ref[...], preferred_element_type=jnp.float32)
            + b_ref[...]
        )


# ----------------------------------------------------------------------------
# Kernel wrappers
# ----------------------------------------------------------------------------
def matmul_bias(x, w, b):
    """x: (M, K), w: (K, N), b: (N,) -> (M, N) f32.  Tokens-x-channels matmul;
    M padded to a 512-row tile grid, N padded to 128 lanes, bf16 DMA / f32 acc."""
    M, K = x.shape
    K2, N = w.shape
    assert K == K2
    Np = _round_up(N, _LANE)
    tile_m = min(_DEF_TILE_M, _round_up(M, 8))
    Mp = _round_up(M, tile_m)

    xp = _pad2(x.astype(jnp.float32), Mp, K).astype(jnp.bfloat16)
    wp = _pad2(w.astype(jnp.float32), K, Np).astype(jnp.bfloat16)
    bp = _pad2(b.reshape(1, N).astype(jnp.float32), 1, Np)

    out = pl.pallas_call(
        _mm_bias_kernel,
        out_shape=jax.ShapeDtypeStruct((Mp, Np), jnp.float32),
        grid_spec=pltpu.PrefetchScalarGridSpec(
            num_scalar_prefetch=0,
            grid=(Mp // tile_m,),
            in_specs=[
                pl.BlockSpec((tile_m, K), lambda i: (i, 0)),
                pl.BlockSpec((K, Np), lambda i: (0, 0)),
                pl.BlockSpec((1, Np), lambda i: (0, 0)),
            ],
            out_specs=pl.BlockSpec((tile_m, Np), lambda i: (i, 0)),
        ),
        compiler_params=pltpu.CompilerParams(
            dimension_semantics=("parallel",),
            vmem_limit_bytes=_VMEM_LIMIT),
    )(xp, wp, bp)
    return out[:M, :N]


def fused_decoder(fattr_tokens, add_tokens, w_cat, b_cat, n_frames, hw):
    """Fused attribute decoder over ALL frames at once.

    fattr_tokens: (n_frames*hw, base); add_tokens: (hw, base) = id_proj + det_proj
    (shared by every frame, tiled to frames via the grid index_map);
    w_cat/b_cat: (base, C+3) concatenated latent|rgb weights with the VAE decode
    pre-folded.  Returns (n_frames, hw, C+3) f32."""
    base = fattr_tokens.shape[-1]
    ncat = w_cat.shape[1]
    Np = _round_up(ncat, _LANE)
    tile_hw = min(_DEF_TILE_M, _round_up(hw, 8))
    hwp = _round_up(hw, tile_hw)

    fa = fattr_tokens.astype(jnp.float32).reshape(n_frames, hw, base)
    fa = jnp.pad(fa, ((0, 0), (0, hwp - hw), (0, 0))).astype(jnp.bfloat16)
    add = _pad2(add_tokens.astype(jnp.float32), hwp, base)
    wp = _pad2(w_cat.astype(jnp.float32), base, Np).astype(jnp.bfloat16)
    bp = _pad2(b_cat.reshape(1, ncat).astype(jnp.float32), 1, Np)

    out = pl.pallas_call(
        _decoder_kernel,
        out_shape=jax.ShapeDtypeStruct((n_frames, hwp, Np), jnp.float32),
        grid_spec=pltpu.PrefetchScalarGridSpec(
            num_scalar_prefetch=0,
            grid=(n_frames, hwp // tile_hw),
            in_specs=[
                pl.BlockSpec((1, tile_hw, base), lambda f, j: (f, j, 0)),
                pl.BlockSpec((tile_hw, base), lambda f, j: (j, 0)),
                pl.BlockSpec((base, Np), lambda f, j: (0, 0)),
                pl.BlockSpec((1, Np), lambda f, j: (0, 0)),
            ],
            out_specs=pl.BlockSpec((1, tile_hw, Np), lambda f, j: (f, j, 0)),
        ),
        compiler_params=pltpu.CompilerParams(
            dimension_semantics=("parallel", "parallel"),
            vmem_limit_bytes=_VMEM_LIMIT),
    )(fa, add, wp, bp)
    return out[:, :hw, :ncat]


def id_extract_full(rgb_tokens, p):
    """rgb_tokens: (M, 3).  One fused kernel pass producing
    global id (1, id_dim) and detailed id tokens (M, det_dim)."""
    M, K = rgb_tokens.shape
    id_dim = p["w_id"].shape[1]
    det_dim = p["w_det"].shape[1]
    idp = _round_up(id_dim, _LANE)
    detp = _round_up(det_dim, _LANE)
    tile_m = min(_DEF_TILE_M, _round_up(M, 8))
    Mp = _round_up(M, tile_m)

    xp = _pad2(rgb_tokens.astype(jnp.float32), Mp, K).astype(jnp.bfloat16)
    wdet = _pad2(p["w_det"].astype(jnp.float32), K, detp).astype(jnp.bfloat16)
    bdet = _pad2(p["b_det"].reshape(1, det_dim).astype(jnp.float32), 1, detp)
    wid = _pad2(p["w_id"].astype(jnp.float32), K, idp).astype(jnp.bfloat16)
    bid = _pad2(p["b_id"].reshape(1, id_dim).astype(jnp.float32), 1, idp)

    kernel = functools.partial(_idext_kernel, inv_m=1.0 / M)
    det, gid = pl.pallas_call(
        kernel,
        out_shape=(jax.ShapeDtypeStruct((Mp, detp), jnp.float32),
                   jax.ShapeDtypeStruct((1, idp), jnp.float32)),
        grid_spec=pltpu.PrefetchScalarGridSpec(
            num_scalar_prefetch=0,
            grid=(Mp // tile_m,),
            in_specs=[
                pl.BlockSpec((tile_m, K), lambda i: (i, 0)),
                pl.BlockSpec((K, detp), lambda i: (0, 0)),
                pl.BlockSpec((1, detp), lambda i: (0, 0)),
                pl.BlockSpec((K, idp), lambda i: (0, 0)),
                pl.BlockSpec((1, idp), lambda i: (0, 0)),
            ],
            out_specs=[
                pl.BlockSpec((tile_m, detp), lambda i: (i, 0)),
                pl.BlockSpec((1, idp), lambda i: (0, 0)),
            ],
            scratch_shapes=[pltpu.VMEM((1, K), jnp.float32)],
        ),
        compiler_params=pltpu.CompilerParams(
            dimension_semantics=("arbitrary",),
            vmem_limit_bytes=_VMEM_LIMIT),
    )(xp, wdet, bdet, wid, bid)
    return gid[:, :id_dim], det[:M, :det_dim]


def pooled_linear(x, w, b):
    """x: (M, C) -> (1, N): global average pool over tokens + linear, tiled
    reduction over M with an f32 VMEM accumulator."""
    M, K = x.shape
    N = w.shape[1]
    Np = _round_up(N, _LANE)
    tile_m = min(_DEF_TILE_M, _round_up(M, 8))
    Mp = _round_up(M, tile_m)

    xp = _pad2(x.astype(jnp.float32), Mp, K).astype(jnp.bfloat16)
    wp = _pad2(w.astype(jnp.float32), K, Np).astype(jnp.bfloat16)
    bp = _pad2(b.reshape(1, N).astype(jnp.float32), 1, Np)

    kernel = functools.partial(_pooled_linear_kernel, inv_m=1.0 / M)
    out = pl.pallas_call(
        kernel,
        out_shape=jax.ShapeDtypeStruct((1, Np), jnp.float32),
        grid_spec=pltpu.PrefetchScalarGridSpec(
            num_scalar_prefetch=0,
            grid=(Mp // tile_m,),
            in_specs=[
                pl.BlockSpec((tile_m, K), lambda i: (i, 0)),
                pl.BlockSpec((K, Np), lambda i: (0, 0)),
                pl.BlockSpec((1, Np), lambda i: (0, 0)),
            ],
            out_specs=pl.BlockSpec((1, Np), lambda i: (0, 0)),
            scratch_shapes=[pltpu.VMEM((1, K), jnp.float32)],
        ),
        compiler_params=pltpu.CompilerParams(
            dimension_semantics=("arbitrary",),
            vmem_limit_bytes=_VMEM_LIMIT),
    )(xp, wp, bp)
    return out[:, :N]


# ----------------------------------------------------------------------------
# Layout glue + model blocks
# ----------------------------------------------------------------------------
def _tokens_to_nchw(tok, n, h, w):
    c = tok.shape[-1]
    return tok.reshape(n, h, w, c).transpose(0, 3, 1, 2)


def discriminator(frame_tokens, n_frames, hw, p):
    """frame_tokens: (n_frames*hw, C) -> patch logits averaged -> (n_frames, 1)."""
    logits_tok = matmul_bias(frame_tokens, p["w_disc"], p["b_disc"])     # (n*hw, 1)
    return jnp.mean(logits_tok.reshape(n_frames, hw, 1), axis=1)         # (n, 1)


# ----------------------------------------------------------------------------
# FALModel.forward (non-training / inference path, B forced to 1)
# ----------------------------------------------------------------------------
def fal_model_forward(target_video, params, source_id_feature=None,
                      global_step=float("inf"), training=False):
    if target_video.shape[0] != 1:
        raise ValueError(f"batch size must be 1, got {target_video.shape[0]}")
    B, F, C, H, W = target_video.shape
    HW = H * W
    b_frames = B * F
    base = params["enc"]["w_fattr"].shape[1]

    # Single boundary transpose: video -> tokens x channels for the whole clip.
    tokens_lat = target_video.transpose(0, 1, 3, 4, 2).reshape(b_frames * HW, C)

    # 1) "VAE decode" of every frame, batched into ONE matmul (torch: per-frame
    #    loop under no_grad).
    rgb_tokens = matmul_bias(tokens_lat, params["vae"]["w_dec"], params["vae"]["b_dec"])
    first_rgb_tokens = rgb_tokens[:HW]                                   # frame 0

    # 2) Fused ID extractor (global + detailed share the activation read).
    original_id, det_tokens = id_extract_full(first_rgb_tokens, params["idx"])
    original_detailed_id = _tokens_to_nchw(det_tokens, B, H, W)          # (1, det, H, W)

    # TODO(synk): id_feature_pool / random ID swap uses Python RNG in torch;
    # deterministically reuse the original ID here (eval-mode behaviour).
    if source_id_feature is None:
        id_feature_to_use, use_same_id = original_id, True
    else:
        id_feature_to_use, use_same_id = source_id_feature, False
    detailed_id_tokens_to_use = det_tokens                               # (HW, det)

    # 3) Fused attribute encoder: fattr + flow via one concatenated weight,
    #    batched over all frames.
    w_enc = jnp.concatenate([params["enc"]["w_fattr"], params["enc"]["w_flow"]], axis=1)
    b_enc = jnp.concatenate([params["enc"]["b_fattr"], params["enc"]["b_flow"]], axis=0)
    enc_out = matmul_bias(tokens_lat, w_enc, b_enc)                      # (F*HW, base+2)
    fattr_tokens = enc_out[:, :base]
    flow_tokens = enc_out[:, base:base + 2]
    fattr = _tokens_to_nchw(fattr_tokens, b_frames, H, W)                # (F, base, H, W)
    flow = _tokens_to_nchw(flow_tokens, b_frames, H, W)                  # (F, 2, H, W)

    # 4) Fused attribute decoder, all frames in ONE kernel.
    #    id_proj / det_proj are frame-invariant -> precompute once and tile to
    #    frames via the grid index_map inside fused_decoder.
    id_proj = matmul_bias(id_feature_to_use,
                          params["dec"]["w_idproj"], params["dec"]["b_idproj"])   # (1, base)
    det_proj = matmul_bias(detailed_id_tokens_to_use,
                           params["dec"]["w_detproj"], params["dec"]["b_detproj"])  # (HW, base)
    add_tokens = det_proj + id_proj                                       # (HW, base)

    # Pre-fold the (purely linear) VAE decode into the decoder output weight so
    # latent and rgb come out of one matmul from the modulated tile.
    w_out, b_out = params["dec"]["w_out"], params["dec"]["b_out"]
    w_dec, b_dec = params["vae"]["w_dec"], params["vae"]["b_dec"]
    w_rgb = w_out @ w_dec
    b_rgb = b_out @ w_dec + b_dec
    w_cat = jnp.concatenate([w_out, w_rgb], axis=1)                       # (base, C+3)
    b_cat = jnp.concatenate([b_out, b_rgb], axis=0)

    dec_out = fused_decoder(fattr_tokens, add_tokens, w_cat, b_cat, b_frames, HW)
    latent_tokens = dec_out[..., :C]                                      # (F, HW, C)
    rgb_out_tokens = dec_out[..., C:C + 3]                                # (F, HW, 3)

    reconstructed_video_flat = latent_tokens.reshape(b_frames, H, W, C).transpose(0, 3, 1, 2)
    reconstructed_rgb_flat = rgb_out_tokens.reshape(b_frames, H, W, 3).transpose(0, 3, 1, 2)

    # 5) Re-encode the reconstruction directly from tokens (no NCHW round trip).
    enc_out_prime = matmul_bias(latent_tokens.reshape(b_frames * HW, C), w_enc, b_enc)
    fattr_prime = _tokens_to_nchw(enc_out_prime[:, :base], b_frames, H, W)

    # 6) ID of the reconstructed first frame (global id only).
    reconstructed_id = pooled_linear(rgb_out_tokens[0],
                                     params["idx"]["w_id"], params["idx"]["b_id"])

    # 7) Discriminator (training branch only).
    if training:
        fake_logits = discriminator(latent_tokens.reshape(b_frames * HW, C),
                                    b_frames, HW, params["disc"])
        real_logits = discriminator(tokens_lat, b_frames, HW, params["disc"])
    else:
        fake_logits = None
        real_logits = None

    # TODO(synk): generate_frame_mask uses Python random in torch; emit the
    # deterministic all-zeros mask (same shape / dtype) here.
    frame_mask = jnp.zeros((1, F, H, W), dtype=jnp.float32)

    results = {
        "reconstructed_video": reconstructed_video_flat,
        "reconstructed_rgb_video": reconstructed_rgb_flat,
        "fattr": fattr,
        "fattr_prime": fattr_prime,
        "flow": flow,
        "frame_mask": frame_mask,
        "original_id": original_id,
        "detailed_original_id": original_detailed_id,
        "reconstructed_id": reconstructed_id,
        "source_id": source_id_feature,
        "is_same_id": use_same_id,
    }
    # TODO(synk): FALLoss / IdentityLoss (training losses) are undefined in the
    # reference module; only the eval-mode forward is reproduced.
    del fake_logits, real_logits
    return results


# ----------------------------------------------------------------------------
# Deterministic parameter construction
# ----------------------------------------------------------------------------
def init_params(key, in_channels, base_channels, id_dim, det_dim, rgb_channels=3):
    ks = jax.random.split(key, 16)
    s = 0.05

    def w(k, shape):
        return (s * jax.random.normal(k, shape)).astype(jnp.float32)

    return {
        "vae": {  # latent -> rgb "decoder"
            "w_dec": w(ks[0], (in_channels, rgb_channels)),
            "b_dec": jnp.zeros((rgb_channels,), jnp.float32),
        },
        "idx": {  # id extractor: global + detailed
            "w_id": w(ks[1], (rgb_channels, id_dim)),
            "b_id": jnp.zeros((id_dim,), jnp.float32),
            "w_det": w(ks[2], (rgb_channels, det_dim)),
            "b_det": jnp.zeros((det_dim,), jnp.float32),
        },
        "enc": {  # attribute encoder
            "w_fattr": w(ks[3], (in_channels, base_channels)),
            "b_fattr": jnp.zeros((base_channels,), jnp.float32),
            "w_flow": w(ks[4], (in_channels, 2)),
            "b_flow": jnp.zeros((2,), jnp.float32),
        },
        "dec": {  # attribute decoder with ID injection
            "w_idproj": w(ks[5], (id_dim, base_channels)),
            "b_idproj": jnp.zeros((base_channels,), jnp.float32),
            "w_detproj": w(ks[6], (det_dim, base_channels)),
            "b_detproj": jnp.zeros((base_channels,), jnp.float32),
            "w_out": w(ks[7], (base_channels, in_channels)),
            "b_out": jnp.zeros((in_channels,), jnp.float32),
        },
        "disc": {  # patch discriminator head
            "w_disc": w(ks[8], (in_channels, 1)),
            "b_disc": jnp.zeros((1,), jnp.float32),
        },
    }


if __name__ == "__main__":
    # Small shapes consistent with the module: B=1 (forced), F frames, latent
    # channels = in_channels, latent spatial H=W, scaled-down feature dims.
    B, F, C, H, W = 1, 2, 4, 8, 8
    base_channels, id_dim, det_dim = 32, 32, 64

    key = jax.random.PRNGKey(0)
    k_params, k_video = jax.random.split(key)
    params = init_params(k_params, C, base_channels, id_dim, det_dim)
    target_video = jax.random.normal(k_video, (B, F, C, H, W), dtype=jnp.float32)

    results = fal_model_forward(target_video, params, source_id_feature=None,
                                training=False)

    jax.block_until_ready(results["reconstructed_video"])
    jax.block_until_ready(results["reconstructed_rgb_video"])
    jax.block_until_ready(results["fattr_prime"])
    jax.block_until_ready(results["reconstructed_id"])

    assert results["reconstructed_video"].shape == (B * F, C, H, W)
    assert results["reconstructed_rgb_video"].shape == (B * F, 3, H, W)
    assert results["fattr"].shape == (B * F, base_channels, H, W)
    assert results["fattr_prime"].shape == (B * F, base_channels, H, W)
    assert results["flow"].shape == (B * F, 2, H, W)
    assert results["original_id"].shape == (1, id_dim)
    assert results["reconstructed_id"].shape == (1, id_dim)
    assert results["detailed_original_id"].shape == (1, det_dim, H, W)
    assert results["frame_mask"].shape == (1, F, H, W)

    print("KERNEL_OK")
</pallas_src>

<mosaic_0001>
module attributes {stable_mosaic.version = 11 : i64} {
  func.func @_mm_bias_kernel(%arg0: i32, %arg1: memref<128x4xbf16, #tpu.memory_space<vmem>>, %arg2: memref<4x128xbf16, #tpu.memory_space<vmem>>, %arg3: memref<1x128xf32, #tpu.memory_space<vmem>>, %arg4: memref<128x128xf32, #tpu.memory_space<vmem>>) attributes {dimension_semantics = [#tpu.dimension_semantics<parallel>], iteration_bounds = array<i64: 1>, scalar_prefetch = 0 : i64, scratch_operands = 0 : i64, tpu.core_type = #tpu.core_type<tc>, window_params = [{transform_indices = @transform_0, window_bounds = array<i64: 128, 4>}, {pipeline_mode = #tpu.pipeline_mode<synchronous>, transform_indices = @transform_1, window_bounds = array<i64: 4, 128>}, {pipeline_mode = #tpu.pipeline_mode<synchronous>, transform_indices = @transform_2, window_bounds = array<i64: 1, 128>}, {transform_indices = @transform_3, window_bounds = array<i64: 128, 128>}]} {
    %c0 = arith.constant 0 : index
    %c0_0 = arith.constant 0 : index
    %0 = vector.load %arg1[%c0, %c0_0] : memref<128x4xbf16, #tpu.memory_space<vmem>>, vector<128x4xbf16>
    %c0_1 = arith.constant 0 : index
    %c0_2 = arith.constant 0 : index
    %1 = vector.load %arg2[%c0_1, %c0_2] : memref<4x128xbf16, #tpu.memory_space<vmem>>, vector<4x128xbf16>
    %cst = arith.constant dense<0.000000e+00> : vector<128x128xf32>
    %2 = tpu.matmul %0, %1, %cst {dimension_numbers = #tpu.dot_dimension_numbers<[1], [0], [0], [1], [0, 0, 1, 1], [], []>} : vector<128x4xbf16>, vector<4x128xbf16>, vector<128x128xf32> -> vector<128x128xf32>
    %c0_3 = arith.constant 0 : index
    %c0_4 = arith.constant 0 : index
    %3 = vector.load %arg3[%c0_3, %c0_4] : memref<1x128xf32, #tpu.memory_space<vmem>>, vector<1x128xf32>
    %4 = vector.broadcast %3 : vector<1x128xf32> to vector<128x128xf32>
    %5 = arith.addf %2, %4 : vector<128x128xf32>
    %c0_5 = arith.constant 0 : index
    %c0_6 = arith.constant 0 : index
    %6 = vector.load %arg4[%c0_5, %c0_6] : memref<128x128xf32, #tpu.memory_space<vmem>>, vector<128x128xf32>
    tpu.vector_store %arg4[%c0_5, %c0_6], %5 {strides = array<i32>} : memref<128x128xf32, #tpu.memory_space<vmem>>, vector<128x128xf32>,
    return
  }
  func.func @transform_0(%arg0: i32) -> (i32, i32) {
    %c0_i32 = arith.constant 0 : i32
    %c0_i32_0 = arith.constant 0 : i32
    return %arg0, %c0_i32 : i32, i32
  }
  func.func @transform_1(%arg0: i32) -> (i32, i32) {
    %c0_i32 = arith.constant 0 : i32
    %c0_i32_0 = arith.constant 0 : i32
    %c0_i32_1 = arith.constant 0 : i32
    return %c0_i32, %c0_i32_0 : i32, i32
  }
  func.func @transform_2(%arg0: i32) -> (i32, i32) {
    %c0_i32 = arith.constant 0 : i32
    %c0_i32_0 = arith.constant 0 : i32
    %c0_i32_1 = arith.constant 0 : i32
    return %c0_i32, %c0_i32_0 : i32, i32
  }
  func.func @transform_3(%arg0: i32) -> (i32, i32) {
    %c0_i32 = arith.constant 0 : i32
    %c0_i32_0 = arith.constant 0 : i32
    return %arg0, %c0_i32 : i32, i32
  }
}

</mosaic_0001>

<llo_original>
// kernel: tpu_custom_call.1
$region0: #{tpu_custom_call.1}
  #allocation0 [shape = 'u32[]', space=smem, size = 0x4, offset = 0x4, fixed_abs, tag = 'smem constant byte address 0x4 - core index']
  #allocation1 [shape = 'u32[72,128]{1,0:T(1,128)}', space=vmem, size = 0x9000, scoped, tag = 'internal scratch']
  %s0 = inlined_call_operand.vmem [shape: bf16[128,4], index: 0, kind: input, shape index: {}]
  %s1 = inlined_call_operand.vmem [shape: bf16[4,128], index: 1, kind: input, shape index: {}]
  %s2 = inlined_call_operand.vmem [shape: f32[1,128], index: 2, kind: input, shape index: {}]
  %s3 = inlined_call_operand.hbm [shape: f32[128,128], index: 3, kind: output, shape index: {}]
  %s4 = sld [smem:[#allocation0]]
  $region22: #{tpu_custom_call.1} parent=0
    _
  %s6 = ssub.s32 1, %s4
  %s7 = scalar_select 0, %s6, %s4
  $region1: #{tpu_custom_call.1} parent=0
    #allocation2 [shape = 'u8[65536]{0}', space=vmem, size = 0x10000, scoped, tag = 'output window, operand 0, single buffered']
    #allocation3 [shape = 's32[1]{0}', space=sflag, size = 0x4, scoped, tag = 'scoped memory for tpu_custom_call.1']
    %8 = vsyncpa [#allocation3], 0
    // Predicated region
    $region2: #{tpu_custom_call.1} parent=1 // pred_check
      _
    $region3: #{tpu_custom_call.1} parent=1 // pred_check_branch
      %10 = sbr.rel (0) target = $region5
    $region4: #{tpu_custom_call.1} parent=1 // pred_region
      _
    $region5: #{tpu_custom_call.1} parent=1 // pred_fallthru
      _
    // Predicated region
    $region6: #{tpu_custom_call.1} parent=1 // pred_check
      _
    $region7: #{tpu_custom_call.1} parent=1 // pred_check_branch
      %12 = sbr.rel (0) target = $region9
    $region8: #{tpu_custom_call.1} parent=1 // pred_region
      _
    $region9: #{tpu_custom_call.1} parent=1 // pred_fallthru
      _
    // Predicated region
    $region10: #{tpu_custom_call.1} parent=1 // pred_check
      _
    $region11: #{tpu_custom_call.1} parent=1 // pred_check_branch
      %14 = sbr.rel (0) target = $region13
    $region12: #{tpu_custom_call.1} parent=1 // pred_region
      _
    $region13: #{tpu_custom_call.1} parent=1 // pred_fallthru
      _
    %v16 = vld [vmem:[%s0] sm:$0xf]
    %v17 = vld [vmem:[%s0 + $0x4] sm:$0xf]
    %v18 = vld [vmem:[%s0 + $0x8] sm:$0xf]
    %v19 = vld [vmem:[%s0 + $0xc] sm:$0xf]
    %v20 = vld [vmem:[%s0 + $0x10] sm:$0xf]
    %v21 = vld [vmem:[%s0 + $0x14] sm:$0xf]
    %v22 = vld [vmem:[%s0 + $0x18] sm:$0xf]
    %v23 = vld [vmem:[%s0 + $0x1c] sm:$0xf]
    %v24 = vld [vmem:[%s0 + $0x20] sm:$0xf]
    %v25 = vld [vmem:[%s0 + $0x24] sm:$0xf]
    %v26 = vld [vmem:[%s0 + $0x28] sm:$0xf]
    %v27 = vld [vmem:[%s0 + $0x2c] sm:$0xf]
    %v28 = vld [vmem:[%s0 + $0x30] sm:$0xf]
    %v29 = vld [vmem:[%s0 + $0x34] sm:$0xf]
    %v30 = vld [vmem:[%s0 + $0x38] sm:$0xf]
    %v31 = vld [vmem:[%s0 + $0x3c] sm:$0xf]
    %v32 = vld [vmem:[%s1] sm:$0x3]
    %v33 = vld [vmem:[%s2] sm:$0x1]
    %v35 = vperm.slane %v33, 0
    %v53 = vunpack.c.l.b16 %v16
    %v54 = vunpack.c.l.b16 %v17
    %v55 = vunpack.c.l.b16 %v18
    %v56 = vunpack.c.l.b16 %v19
    %v57 = vunpack.c.l.b16 %v20
    %v58 = vunpack.c.l.b16 %v21
    %v59 = vunpack.c.l.b16 %v22
    %v60 = vunpack.c.l.b16 %v23
    %v61 = vunpack.c.l.b16 %v24
    %v62 = vunpack.c.l.b16 %v25
    %v63 = vunpack.c.l.b16 %v26
    %v64 = vunpack.c.l.b16 %v27
    %v65 = vunpack.c.l.b16 %v28
    %v66 = vunpack.c.l.b16 %v29
    %v67 = vunpack.c.l.b16 %v30
    %v68 = vunpack.c.l.b16 %v31
    %v69 = vpack.c.b16 %v54, %v53
    %v70 = vpack.c.b16 %v56, %v55
    %v71 = vpack.c.b16 %v58, %v57
    %v72 = vpack.c.b16 %v60, %v59
    %v73 = vpack.c.b16 %v62, %v61
    %v74 = vpack.c.b16 %v64, %v63
    %v75 = vpack.c.b16 %v66, %v65
    %v76 = vpack.c.b16 %v68, %v67
    %vm77 = vcmask 31744
    %v79 = vsel %vm77, %v69, 0
    %v82 = vsel %vm77, %v70, 0
    %v85 = vsel %vm77, %v71, 0
    %v88 = vsel %vm77, %v72, 0
    %v91 = vsel %vm77, %v73, 0
    %v94 = vsel %vm77, %v74, 0
    %v97 = vsel %vm77, %v75, 0
    %v100 = vsel %vm77, %v76, 0
    %vm102 = vcmask 1041408
    %v104 = vsel %vm102, %v32, 0
    %106 = vmatpush.bf16.msra.mxu0 0
    %107 = vmatpush.bf16.msra.mxu0 0
    %108 = vmatpush.bf16.msra.mxu0 0
    %109 = vmatpush.bf16.msra.mxu0 0
    %110 = vmatpush.bf16.msra.mxu0 0
    %111 = vmatpush.bf16.msra.mxu0 0
    %112 = vmatpush.bf16.msra.mxu0 0
    %113 = vmatpush.bf16.msra.mxu0 %v104
    %114 = vmatmul.bf16.gmra.mxu0 %v79
    %v115 = vpop.f32.mrf.mxu0
    %v116 = vadd.f32 %v35, %v115
    %v117 = vpop.f32.mrf.mxu0
    %v118 = vadd.f32 %v35, %v117
    %119 = vmatmul.bf16.gmra.mxu0 %v82
    %v120 = vpop.f32.mrf.mxu0
    %v121 = vadd.f32 %v35, %v120
    %v122 = vpop.f32.mrf.mxu0
    %v123 = vadd.f32 %v35, %v122
    %124 = vmatmul.bf16.gmra.mxu0 %v85
    %v125 = vpop.f32.mrf.mxu0
    %v126 = vadd.f32 %v35, %v125
    %v127 = vpop.f32.mrf.mxu0
    %v128 = vadd.f32 %v35, %v127
    %129 = vmatmul.bf16.gmra.mxu0 %v88
    %v130 = vpop.f32.mrf.mxu0
    %v131 = vadd.f32 %v35, %v130
    %v132 = vpop.f32.mrf.mxu0
    %v133 = vadd.f32 %v35, %v132
    %134 = vmatmul.bf16.gmra.mxu0 %v91
    %v135 = vpop.f32.mrf.mxu0
    %v136 = vadd.f32 %v35, %v135
    %v137 = vpop.f32.mrf.mxu0
    %v138 = vadd.f32 %v35, %v137
    %139 = vmatmul.bf16.gmra.mxu0 %v94
    %v140 = vpop.f32.mrf.mxu0
    %v141 = vadd.f32 %v35, %v140
    %v142 = vpop.f32.mrf.mxu0
    %v143 = vadd.f32 %v35, %v142
    %144 = vmatmul.bf16.gmra.mxu0 %v97
    %v145 = vpop.f32.mrf.mxu0
    %v146 = vadd.f32 %v35, %v145
    %v147 = vpop.f32.mrf.mxu0
    %v148 = vadd.f32 %v35, %v147
    %149 = vmatmul.bf16.gmra.mxu0 %v100
    %v150 = vpop.f32.mrf.mxu0
    %v151 = vadd.f32 %v35, %v150
    %v152 = vpop.f32.mrf.mxu0
    %v153 = vadd.f32 %v35, %v152
    %154 = vdwg.mxu0
    %155 = vst [vmem:[#allocation2] sm:$0xff] %v116
    %156 = vst [vmem:[#allocation2 + $0x8] sm:$0xff] %v118
    %157 = vst [vmem:[#allocation2 + $0x10] sm:$0xff] %v121
    %158 = vst [vmem:[#allocation2 + $0x18] sm:$0xff] %v123
    %159 = vst [vmem:[#allocation2 + $0x20] sm:$0xff] %v126
    %160 = vst [vmem:[#allocation2 + $0x28] sm:$0xff] %v128
    %161 = vst [vmem:[#allocation2 + $0x30] sm:$0xff] %v131
    %162 = vst [vmem:[#allocation2 + $0x38] sm:$0xff] %v133
    %163 = vst [vmem:[#allocation2 + $0x40] sm:$0xff] %v136
    %164 = vst [vmem:[#allocation2 + $0x48] sm:$0xff] %v138
    %165 = vst [vmem:[#allocation2 + $0x50] sm:$0xff] %v141
    %166 = vst [vmem:[#allocation2 + $0x58] sm:$0xff] %v143
    %167 = vst [vmem:[#allocation2 + $0x60] sm:$0xff] %v146
    %168 = vst [vmem:[#allocation2 + $0x68] sm:$0xff] %v148
    %169 = vst [vmem:[#allocation2 + $0x70] sm:$0xff] %v151
    %170 = vst [vmem:[#allocation2 + $0x78] sm:$0xff] %v153
    // Predicated region
    $region14: #{tpu_custom_call.1} parent=1 // pred_check
      _
    $region15: #{tpu_custom_call.1} parent=1 // pred_check_branch
      %172 = sbr.rel (0) target = $region17
    $region16: #{tpu_custom_call.1} parent=1 // pred_region
      %174 = vsyncadd [#allocation3], 0
      %s175 = sshll.u32 [#allocation2], 4
      %s176 = int_to_ptr.vmem [resolvable:$true] %s175
      %s177 = sshll.u32 %s3, 4
      %s178 = int_to_ptr.hbm [resolvable:$true] %s177
      %183 = dma.vmem_to_hbm [thread:$0]  %s176, 2048, %s178, [#allocation3], 128, 128, 8
    $region17: #{tpu_custom_call.1} parent=1 // pred_fallthru
      _
    // Predicated region
    $region18: #{tpu_custom_call.1} parent=1 // pred_check
      _
    $region19: #{tpu_custom_call.1} parent=1 // pred_check_branch
      %185 = sbr.rel (0) target = $region21
    $region20: #{tpu_custom_call.1} parent=1 // pred_region
      %187 = dma.done [#allocation3], 2048
    $region21: #{tpu_custom_call.1} parent=1 // pred_fallthru
      _
    %188 = vsyncpa [#allocation3], 1

</llo_original>
